<compile_context>
chip_gen: v7x
topology: tpu7x:2x2x1
jax: 0.10.0
libtpu: 0.0.40
codegen_flags: <defaults>
</compile_context>

<pallas_src>
import functools
import math

import jax
import jax.numpy as jnp
from jax import lax
from jax.experimental import pallas as pl
from jax.experimental.pallas import tpu as pltpu

_LANES = 128


def _round_up(x, m):
    return ((x + m - 1) // m) * m


def _left_halo(pad):
    return _round_up(pad, _LANES) if pad > 0 else 0


def _gelu_exact(x):
    # torch.nn.GELU default (approximate='none'): 0.5*x*(1+erf(x/sqrt(2)))
    return 0.5 * x * (1.0 + lax.erf(x * (1.0 / jnp.sqrt(2.0).astype(x.dtype))))


def residual_block_kernel(x_ref, bns_ref, bnb_ref, w1_ref, b1_ref, w2_ref,
                          b2_ref, o_ref, xpad_ref, *, n_blocks, ksize,
                          dilation, t_valid):
    """One grid step = one batch element, native NCT layout.

    x_ref:   (1, C, T)        current batch element (channels=sublanes, time=lanes)
    bns_ref/bnb_ref: (n, C, 1) folded eval-mode BN scale / shift per block
    w1_ref:  (n, H, K*C)      fused tap-major conv1 weight, K**-0.5 pre-folded
    b1_ref:  (n, H, 1)        conv1 bias, K**-0.5 pre-folded (f32)
    w2_ref:  (n, C, H)        1x1 conv2 weight
    b2_ref:  (n, C, 1)        conv2 bias (f32)
    o_ref:   (1, C, T)
    xpad_ref: VMEM scratch (C, L + T + pad) in the matmul dtype -- zero-haloed
              conv input with a lane-aligned interior at column offset L.
    t_valid: number of real (un-padded) time steps; columns >= t_valid behave
             like the conv zero-halo and are masked out of the output anyway.
    """
    pad = dilation * (ksize - 1) // 2
    L = _left_halo(pad)
    mm_dtype = w1_ref.dtype

    x = x_ref[0].astype(jnp.float32)                       # (C, T)
    C, T = x.shape

    # nonpadding mask from the ORIGINAL x: |x| summed over channels > 0.
    nonpad = (jnp.sum(jnp.abs(x), axis=0, keepdims=True) > 0.0
              ).astype(jnp.float32)                        # (1, T)

    # Static valid mask: only needed when T was padded up to a lane multiple.
    # Padded columns must look like the conv zero-halo (x there is 0, but the
    # BN shift would otherwise leak bnb into them).
    if t_valid < T:
        valid = (lax.broadcasted_iota(jnp.int32, (1, T), 1) < t_valid
                 ).astype(jnp.float32)                     # (1, T)
    else:
        valid = None

    # Zero the halo once; the lane-aligned interior is rewritten every block.
    if pad > 0:
        xpad_ref[...] = jnp.zeros_like(xpad_ref)

    for blk in range(n_blocks):
        # BatchNorm1d (eval) == per-channel affine.
        x_bn = x * bns_ref[blk] + bnb_ref[blk]             # (C, T) f32
        if valid is not None:
            x_bn = x_bn * valid

        # One lane-aligned, lane-dense store; the K dilated taps are read back
        # as static-offset ref loads (no jnp.pad, no value-level slices).
        xpad_ref[:, L:L + T] = x_bn.astype(mm_dtype)
        taps = [xpad_ref[:, L - pad + k * dilation:L - pad + k * dilation + T]
                for k in range(ksize)]
        x_win = jnp.concatenate(taps, axis=0)              # (K*C, T) mm_dtype

        # Dilated conv as ONE fused MXU matmul, f32 accumulation.
        # K**-0.5 is already folded into w1/b1.
        acc = jnp.dot(w1_ref[blk], x_win,
                      preferred_element_type=jnp.float32) + b1_ref[blk]  # (H, T)
        h = _gelu_exact(acc).astype(mm_dtype)                            # (H, T)

        # 1x1 conv == plain matmul.
        y = jnp.dot(w2_ref[blk], h,
                    preferred_element_type=jnp.float32) + b2_ref[blk]    # (C, T)

        # Residual + nonpadding mask.
        x = (x + y) * nonpad

    o_ref[0] = x.astype(o_ref.dtype)


def residual_block(x_nct, params, kernel_size, dilation, *,
                   compute_dtype=jnp.bfloat16):
    """Pallas wrapper. x_nct: (B, C, T) exactly like the PyTorch module."""
    gamma, beta, rmean, rvar, w1, b1, w2, b2 = params
    B, C, T = x_nct.shape
    n_blocks, H, Cw, K = w1.shape
    assert Cw == C and K == kernel_size
    assert (kernel_size - 1) * dilation % 2 == 0, (
        "pad = dilation*(K-1)//2 only gives 'same' length when (K-1)*dilation "
        "is even (PyTorch Conv1d would otherwise change the length).")
    pad = dilation * (kernel_size - 1) // 2
    L = _left_halo(pad)
    bn_eps = 1e-5

    # Pad T up to a lane multiple so MXU passes and output stores are lane-dense.
    Tp = max(_LANES, _round_up(T, _LANES))
    x_in = x_nct if Tp == T else jnp.pad(x_nct, ((0, 0), (0, 0), (0, Tp - T)))

    # Fold eval-mode BatchNorm1d into a per-channel affine (weight-sized op).
    scale = gamma * lax.rsqrt(rvar + bn_eps)                      # (n, C)
    bns = scale[:, :, None]                                       # (n, C, 1)
    bnb = (beta - rmean * scale)[:, :, None]                      # (n, C, 1)

    # Fused tap-major conv1 weight with K**-0.5 folded in:
    #   w1f[n, h, k*C + c] = w1[n, h, c, k] * K**-0.5
    inv_sqrt_k = kernel_size ** (-0.5)
    w1f = (jnp.transpose(w1, (0, 1, 3, 2)).reshape(n_blocks, H, K * C)
           * inv_sqrt_k).astype(compute_dtype)                    # (n, H, K*C)
    w2k = w2.astype(compute_dtype)                                # (n, C, H)
    b1k = (b1 * inv_sqrt_k)[:, :, None].astype(jnp.float32)       # (n, H, 1)
    b2k = b2[:, :, None].astype(jnp.float32)                      # (n, C, 1)

    kern = functools.partial(residual_block_kernel, n_blocks=n_blocks,
                             ksize=kernel_size, dilation=dilation, t_valid=T)

    # Scoped-VMEM limit: generation-aware (v5e/v6e 128 MiB, v7x 64 MiB physical),
    # sized from the actual tile footprint with a 32 MiB floor.
    def nbytes(shape, dtype):
        return math.prod(shape) * jnp.dtype(dtype).itemsize
    xblk = nbytes((1, C, Tp), x_in.dtype)
    wts = (2 * nbytes((n_blocks, C, 1), jnp.float32)
           + nbytes(w1f.shape, compute_dtype) + nbytes(w2k.shape, compute_dtype)
           + nbytes(b1k.shape, jnp.float32) + nbytes(b2k.shape, jnp.float32))
    scratch_bytes = nbytes((C, L + Tp + pad), compute_dtype)
    est = 4 * xblk + 2 * wts + scratch_bytes + 10 * xblk  # dbl-buf I/O + consts + f32 temps
    try:
        vmem_cap = int(pltpu.get_tpu_info().vmem_capacity_bytes)
    except Exception:
        vmem_cap = 128 * 2**20
    vmem_limit = int(min(int(0.85 * vmem_cap), max(32 * 2**20, 4 * est)))

    # Advisory cost estimate for XLA's scheduler around the custom call.
    flops = 2 * B * n_blocks * (H * K * C + C * H) * Tp
    transcendentals = B * n_blocks * H * Tp
    bytes_accessed = (2 * B * C * Tp * x_in.dtype.itemsize
                      + w1f.size * w1f.dtype.itemsize
                      + w2k.size * w2k.dtype.itemsize
                      + 4 * (bns.size + bnb.size + b1k.size + b2k.size))
    cost = pl.CostEstimate(flops=int(flops), transcendentals=int(transcendentals),
                           bytes_accessed=int(bytes_accessed))

    out = pl.pallas_call(
        kern,
        out_shape=jax.ShapeDtypeStruct((B, C, Tp), x_nct.dtype),
        grid=(B,),
        in_specs=[
            pl.BlockSpec((1, C, Tp), lambda b: (b, 0, 0)),
            pl.BlockSpec((n_blocks, C, 1), lambda b: (0, 0, 0)),
            pl.BlockSpec((n_blocks, C, 1), lambda b: (0, 0, 0)),
            pl.BlockSpec((n_blocks, H, K * C), lambda b: (0, 0, 0)),
            pl.BlockSpec((n_blocks, H, 1), lambda b: (0, 0, 0)),
            pl.BlockSpec((n_blocks, C, H), lambda b: (0, 0, 0)),
            pl.BlockSpec((n_blocks, C, 1), lambda b: (0, 0, 0)),
        ],
        out_specs=pl.BlockSpec((1, C, Tp), lambda b: (b, 0, 0)),
        scratch_shapes=[pltpu.VMEM((C, L + Tp + pad), compute_dtype)],
        compiler_params=pltpu.CompilerParams(
            dimension_semantics=("parallel",),
            vmem_limit_bytes=vmem_limit),
        cost_estimate=cost,
    )(x_in, bns, bnb, w1f, b1k, w2k, b2k)

    return out if Tp == T else out[:, :, :T]


def residual_block_ref(x_nct, params, kernel_size, dilation):
    """Pure-JAX reference mirroring the PyTorch module (eval-mode BN)."""
    gamma, beta, rmean, rvar, w1, b1, w2, b2 = params
    bn_eps = 1e-5
    pad = dilation * (kernel_size - 1) // 2
    nonpad = (jnp.abs(x_nct).sum(axis=1) > 0).astype(x_nct.dtype)[:, None, :]
    x = x_nct
    n_blocks = w1.shape[0]
    for blk in range(n_blocks):
        s = gamma[blk] * lax.rsqrt(rvar[blk] + bn_eps)
        x_bn = ((x - rmean[blk][None, :, None]) * s[None, :, None]
                + beta[blk][None, :, None])
        y = lax.conv_general_dilated(x_bn, w1[blk], window_strides=(1,),
                                     padding=[(pad, pad)],
                                     rhs_dilation=(dilation,),
                                     dimension_numbers=('NCH', 'OIH', 'NCH'))
        y = y + b1[blk][None, :, None]
        y = _gelu_exact(y * kernel_size ** (-0.5))
        y2 = lax.conv_general_dilated(y, w2[blk][:, :, None],
                                      window_strides=(1,), padding=[(0, 0)],
                                      dimension_numbers=('NCH', 'OIH', 'NCH'))
        y2 = y2 + b2[blk][None, :, None]
        x = (x + y2) * nonpad
    return x


def make_params(key, channels, kernel_size, n_blocks=2, c_multiple=2):
    """PyTorch-convention parameters: BN stats + Conv1d weights."""
    C, K, H = channels, kernel_size, c_multiple * channels
    ks = jax.random.split(key, 8)
    gamma = 1.0 + 0.1 * jax.random.normal(ks[0], (n_blocks, C), jnp.float32)
    beta = 0.1 * jax.random.normal(ks[1], (n_blocks, C), jnp.float32)
    rmean = 0.1 * jax.random.normal(ks[2], (n_blocks, C), jnp.float32)
    rvar = 1.0 + 0.1 * jnp.abs(jax.random.normal(ks[3], (n_blocks, C), jnp.float32))
    w1 = 0.1 * jax.random.normal(ks[4], (n_blocks, H, C, K), jnp.float32)  # (out,in,K)
    b1 = 0.1 * jax.random.normal(ks[5], (n_blocks, H), jnp.float32)
    w2 = 0.1 * jax.random.normal(ks[6], (n_blocks, C, H), jnp.float32)     # 1x1 conv
    b2 = 0.1 * jax.random.normal(ks[7], (n_blocks, C), jnp.float32)
    return (gamma, beta, rmean, rvar, w1, b1, w2, b2)


if __name__ == "__main__":
    B, C, T = 2, 8, 16
    K, DIL = 5, 2

    key = jax.random.PRNGKey(0)
    kp, kx = jax.random.split(key)
    params = make_params(kp, C, K)

    x = jax.random.normal(kx, (B, C, T), jnp.float32)
    # Zero out trailing frames so the nonpadding mask actually does something.
    x = x.at[:, :, 12:].set(0.0)

    ref = residual_block_ref(x, params, K, DIL)

    # f32-matmul path: tight check against the pure-JAX reference.
    out_f32 = jax.block_until_ready(
        residual_block(x, params, K, DIL, compute_dtype=jnp.float32))
    assert out_f32.shape == (B, C, T)
    assert jnp.allclose(out_f32, ref, atol=1e-4, rtol=1e-4), (
        f"f32 max abs err {jnp.max(jnp.abs(out_f32 - ref))}")

    # Default bf16-matmul path (~2x MXU throughput): relaxed tolerance.
    out_bf16 = jax.block_until_ready(residual_block(x, params, K, DIL))
    assert out_bf16.shape == (B, C, T)
    assert jnp.allclose(out_bf16, ref, atol=2e-2, rtol=2e-2), (
        f"bf16 max abs err {jnp.max(jnp.abs(out_bf16 - ref))}")

    print("KERNEL_OK")
</pallas_src>

<mosaic_0001>
module attributes {stable_mosaic.version = 11 : i64} {
  func.func @residual_block_kernel(%arg0: i32, %arg1: memref<1x8x128xf32, #tpu.memory_space<vmem>>, %arg2: memref<2x8x1xf32, #tpu.memory_space<vmem>>, %arg3: memref<2x8x1xf32, #tpu.memory_space<vmem>>, %arg4: memref<2x16x40xf32, #tpu.memory_space<vmem>>, %arg5: memref<2x16x1xf32, #tpu.memory_space<vmem>>, %arg6: memref<2x8x16xf32, #tpu.memory_space<vmem>>, %arg7: memref<2x8x1xf32, #tpu.memory_space<vmem>>, %arg8: memref<1x8x128xf32, #tpu.memory_space<vmem>>, %arg9: memref<8x260xf32, #tpu.memory_space<vmem>>) attributes {dimension_semantics = [#tpu.dimension_semantics<parallel>], iteration_bounds = array<i64: 2>, scalar_prefetch = 0 : i64, scratch_operands = 1 : i64, tpu.core_type = #tpu.core_type<tc>, window_params = [{transform_indices = @transform_0, window_bounds = array<i64: 1, 8, 128>}, {pipeline_mode = #tpu.pipeline_mode<synchronous>, transform_indices = @transform_1, window_bounds = array<i64: 2, 8, 1>}, {pipeline_mode = #tpu.pipeline_mode<synchronous>, transform_indices = @transform_2, window_bounds = array<i64: 2, 8, 1>}, {pipeline_mode = #tpu.pipeline_mode<synchronous>, transform_indices = @transform_3, window_bounds = array<i64: 2, 16, 40>}, {pipeline_mode = #tpu.pipeline_mode<synchronous>, transform_indices = @transform_4, window_bounds = array<i64: 2, 16, 1>}, {pipeline_mode = #tpu.pipeline_mode<synchronous>, transform_indices = @transform_5, window_bounds = array<i64: 2, 8, 16>}, {pipeline_mode = #tpu.pipeline_mode<synchronous>, transform_indices = @transform_6, window_bounds = array<i64: 2, 8, 1>}, {transform_indices = @transform_7, window_bounds = array<i64: 1, 8, 128>}]} {
    %c0 = arith.constant 0 : index
    %c0_0 = arith.constant 0 : index
    %c0_1 = arith.constant 0 : index
    %0 = vector.load %arg1[%c0, %c0_0, %c0_1] : memref<1x8x128xf32, #tpu.memory_space<vmem>>, vector<1x8x128xf32>
    %1 = vector.shape_cast %0 : vector<1x8x128xf32> to vector<8x128xf32>
    %2 = math.absf %1 : vector<8x128xf32>
    %cst = arith.constant dense<0.000000e+00> : vector<128xf32>
    %3 = vector.multi_reduction <add>, %2, %cst [0] : vector<8x128xf32> to vector<128xf32>
    %4 = vector.shape_cast %3 : vector<128xf32> to vector<1x128xf32>
    %cst_2 = arith.constant 0.000000e+00 : f32
    %5 = vector.broadcast %cst_2 : f32 to vector<1x128xf32>
    %6 = arith.cmpf ogt, %4, %5 : vector<1x128xf32>
    %7 = arith.extui %6 : vector<1x128xi1> to vector<1x128xi32>
    %8 = arith.sitofp %7 : vector<1x128xi32> to vector<1x128xf32>
    %9 = tpu.iota {dimensions = array<i32: 1>} : vector<1x128xi32>
    %c16_i32 = arith.constant 16 : i32
    %10 = vector.broadcast %c16_i32 : i32 to vector<1x128xi32>
    %11 = arith.cmpi slt, %9, %10 : vector<1x128xi32>
    %12 = arith.extui %11 : vector<1x128xi1> to vector<1x128xi32>
    %13 = arith.sitofp %12 : vector<1x128xi32> to vector<1x128xf32>
    %cst_3 = arith.constant 0.000000e+00 : f32
    %14 = vector.broadcast %cst_3 : f32 to vector<8x260xf32>
    %c0_4 = arith.constant 0 : index
    %c0_5 = arith.constant 0 : index
    %15 = vector.load %arg9[%c0_4, %c0_5] : memref<8x260xf32, #tpu.memory_space<vmem>>, vector<8x260xf32>
    tpu.vector_store %arg9[%c0_4, %c0_5], %14 {strides = array<i32>} : memref<8x260xf32, #tpu.memory_space<vmem>>, vector<8x260xf32>,
    %c0_6 = arith.constant 0 : index
    %c0_7 = arith.constant 0 : index
    %c0_8 = arith.constant 0 : index
    %16 = vector.load %arg2[%c0_6, %c0_7, %c0_8] : memref<2x8x1xf32, #tpu.memory_space<vmem>>, vector<1x8x1xf32>
    %17 = vector.shape_cast %16 : vector<1x8x1xf32> to vector<8x1xf32>
    %18 = vector.broadcast %17 : vector<8x1xf32> to vector<8x128xf32>
    %19 = arith.mulf %1, %18 : vector<8x128xf32>
    %c0_9 = arith.constant 0 : index
    %c0_10 = arith.constant 0 : index
    %c0_11 = arith.constant 0 : index
    %20 = vector.load %arg3[%c0_9, %c0_10, %c0_11] : memref<2x8x1xf32, #tpu.memory_space<vmem>>, vector<1x8x1xf32>
    %21 = vector.shape_cast %20 : vector<1x8x1xf32> to vector<8x1xf32>
    %22 = vector.broadcast %21 : vector<8x1xf32> to vector<8x128xf32>
    %23 = arith.addf %19, %22 : vector<8x128xf32>
    %24 = vector.broadcast %13 : vector<1x128xf32> to vector<8x128xf32>
    %25 = arith.mulf %23, %24 : vector<8x128xf32>
    %c0_12 = arith.constant 0 : index
    %c128 = arith.constant 128 : index
    %26 = vector.load %arg9[%c0_12, %c128] : memref<8x260xf32, #tpu.memory_space<vmem>>, vector<8x128xf32>
    tpu.vector_store %arg9[%c0_12, %c128], %25 {strides = array<i32>} : memref<8x260xf32, #tpu.memory_space<vmem>>, vector<8x128xf32>,
    %c0_13 = arith.constant 0 : index
    %c124 = arith.constant 124 : index
    %27 = vector.load %arg9[%c0_13, %c124] : memref<8x260xf32, #tpu.memory_space<vmem>>, vector<8x128xf32>
    %c0_14 = arith.constant 0 : index
    %c126 = arith.constant 126 : index
    %28 = vector.load %arg9[%c0_14, %c126] : memref<8x260xf32, #tpu.memory_space<vmem>>, vector<8x128xf32>
    %c0_15 = arith.constant 0 : index
    %c128_16 = arith.constant 128 : index
    %29 = vector.load %arg9[%c0_15, %c128_16] : memref<8x260xf32, #tpu.memory_space<vmem>>, vector<8x128xf32>
    %c0_17 = arith.constant 0 : index
    %c130 = arith.constant 130 : index
    %30 = vector.load %arg9[%c0_17, %c130] : memref<8x260xf32, #tpu.memory_space<vmem>>, vector<8x128xf32>
    %c0_18 = arith.constant 0 : index
    %c132 = arith.constant 132 : index
    %31 = vector.load %arg9[%c0_18, %c132] : memref<8x260xf32, #tpu.memory_space<vmem>>, vector<8x128xf32>
    %32 = tpu.concatenate %27, %28, %29, %30, %31 in 0 : vector<8x128xf32>, vector<8x128xf32>, vector<8x128xf32>, vector<8x128xf32>, vector<8x128xf32> -> vector<40x128xf32>
    %c0_19 = arith.constant 0 : index
    %c0_20 = arith.constant 0 : index
    %c0_21 = arith.constant 0 : index
    %33 = vector.load %arg4[%c0_19, %c0_20, %c0_21] : memref<2x16x40xf32, #tpu.memory_space<vmem>>, vector<1x16x40xf32>
    %34 = vector.shape_cast %33 : vector<1x16x40xf32> to vector<16x40xf32>
    %cst_22 = arith.constant dense<0.000000e+00> : vector<16x128xf32>
    %35 = tpu.matmul %34, %32, %cst_22 {dimension_numbers = #tpu.dot_dimension_numbers<[1], [0], [0], [1], [0, 0, 1, 1], [], []>} : vector<16x40xf32>, vector<40x128xf32>, vector<16x128xf32> -> vector<16x128xf32>
    %c0_23 = arith.constant 0 : index
    %c0_24 = arith.constant 0 : index
    %c0_25 = arith.constant 0 : index
    %36 = vector.load %arg5[%c0_23, %c0_24, %c0_25] : memref<2x16x1xf32, #tpu.memory_space<vmem>>, vector<1x16x1xf32>
    %37 = vector.shape_cast %36 : vector<1x16x1xf32> to vector<16x1xf32>
    %38 = vector.broadcast %37 : vector<16x1xf32> to vector<16x128xf32>
    %39 = arith.addf %35, %38 : vector<16x128xf32>
    %cst_26 = arith.constant 5.000000e-01 : f32
    %40 = vector.broadcast %cst_26 : f32 to vector<16x128xf32>
    %41 = arith.mulf %40, %39 : vector<16x128xf32>
    %cst_27 = arith.constant 2.000000e+00 : f32
    %42 = math.sqrt %cst_27 : f32
    %cst_28 = arith.constant 1.000000e+00 : f32
    %43 = arith.divf %cst_28, %42 : f32
    %44 = vector.broadcast %43 : f32 to vector<16x128xf32>
    %45 = arith.mulf %39, %44 : vector<16x128xf32>
    %46 = math.erf %45 : vector<16x128xf32>
    %cst_29 = arith.constant 1.000000e+00 : f32
    %47 = vector.broadcast %cst_29 : f32 to vector<16x128xf32>
    %48 = arith.addf %47, %46 : vector<16x128xf32>
    %49 = arith.mulf %41, %48 : vector<16x128xf32>
    %c0_30 = arith.constant 0 : index
    %c0_31 = arith.constant 0 : index
    %c0_32 = arith.constant 0 : index
    %50 = vector.load %arg6[%c0_30, %c0_31, %c0_32] : memref<2x8x16xf32, #tpu.memory_space<vmem>>, vector<1x8x16xf32>
    %51 = vector.shape_cast %50 : vector<1x8x16xf32> to vector<8x16xf32>
    %cst_33 = arith.constant dense<0.000000e+00> : vector<8x128xf32>
    %52 = tpu.matmul %51, %49, %cst_33 {dimension_numbers = #tpu.dot_dimension_numbers<[1], [0], [0], [1], [0, 0, 1, 1], [], []>} : vector<8x16xf32>, vector<16x128xf32>, vector<8x128xf32> -> vector<8x128xf32>
    %c0_34 = arith.constant 0 : index
    %c0_35 = arith.constant 0 : index
    %c0_36 = arith.constant 0 : index
    %53 = vector.load %arg7[%c0_34, %c0_35, %c0_36] : memref<2x8x1xf32, #tpu.memory_space<vmem>>, vector<1x8x1xf32>
    %54 = vector.shape_cast %53 : vector<1x8x1xf32> to vector<8x1xf32>
    %55 = vector.broadcast %54 : vector<8x1xf32> to vector<8x128xf32>
    %56 = arith.addf %52, %55 : vector<8x128xf32>
    %57 = arith.addf %1, %56 : vector<8x128xf32>
    %58 = vector.broadcast %8 : vector<1x128xf32> to vector<8x128xf32>
    %59 = arith.mulf %57, %58 : vector<8x128xf32>
    %c1 = arith.constant 1 : index
    %c0_37 = arith.constant 0 : index
    %c0_38 = arith.constant 0 : index
    %60 = vector.load %arg2[%c1, %c0_37, %c0_38] : memref<2x8x1xf32, #tpu.memory_space<vmem>>, vector<1x8x1xf32>
    %61 = vector.shape_cast %60 : vector<1x8x1xf32> to vector<8x1xf32>
    %62 = vector.broadcast %61 : vector<8x1xf32> to vector<8x128xf32>
    %63 = arith.mulf %59, %62 : vector<8x128xf32>
    %c1_39 = arith.constant 1 : index
    %c0_40 = arith.constant 0 : index
    %c0_41 = arith.constant 0 : index
    %64 = vector.load %arg3[%c1_39, %c0_40, %c0_41] : memref<2x8x1xf32, #tpu.memory_space<vmem>>, vector<1x8x1xf32>
    %65 = vector.shape_cast %64 : vector<1x8x1xf32> to vector<8x1xf32>
    %66 = vector.broadcast %65 : vector<8x1xf32> to vector<8x128xf32>
    %67 = arith.addf %63, %66 : vector<8x128xf32>
    %68 = vector.broadcast %13 : vector<1x128xf32> to vector<8x128xf32>
    %69 = arith.mulf %67, %68 : vector<8x128xf32>
    %c0_42 = arith.constant 0 : index
    %c128_43 = arith.constant 128 : index
    %70 = vector.load %arg9[%c0_42, %c128_43] : memref<8x260xf32, #tpu.memory_space<vmem>>, vector<8x128xf32>
    tpu.vector_store %arg9[%c0_42, %c128_43], %69 {strides = array<i32>} : memref<8x260xf32, #tpu.memory_space<vmem>>, vector<8x128xf32>,
    %c0_44 = arith.constant 0 : index
    %c124_45 = arith.constant 124 : index
    %71 = vector.load %arg9[%c0_44, %c124_45] : memref<8x260xf32, #tpu.memory_space<vmem>>, vector<8x128xf32>
    %c0_46 = arith.constant 0 : index
    %c126_47 = arith.constant 126 : index
    %72 = vector.load %arg9[%c0_46, %c126_47] : memref<8x260xf32, #tpu.memory_space<vmem>>, vector<8x128xf32>
    %c0_48 = arith.constant 0 : index
    %c128_49 = arith.constant 128 : index
    %73 = vector.load %arg9[%c0_48, %c128_49] : memref<8x260xf32, #tpu.memory_space<vmem>>, vector<8x128xf32>
    %c0_50 = arith.constant 0 : index
    %c130_51 = arith.constant 130 : index
    %74 = vector.load %arg9[%c0_50, %c130_51] : memref<8x260xf32, #tpu.memory_space<vmem>>, vector<8x128xf32>
    %c0_52 = arith.constant 0 : index
    %c132_53 = arith.constant 132 : index
    %75 = vector.load %arg9[%c0_52, %c132_53] : memref<8x260xf32, #tpu.memory_space<vmem>>, vector<8x128xf32>
    %76 = tpu.concatenate %71, %72, %73, %74, %75 in 0 : vector<8x128xf32>, vector<8x128xf32>, vector<8x128xf32>, vector<8x128xf32>, vector<8x128xf32> -> vector<40x128xf32>
    %c1_54 = arith.constant 1 : index
    %c0_55 = arith.constant 0 : index
    %c0_56 = arith.constant 0 : index
    %77 = vector.load %arg4[%c1_54, %c0_55, %c0_56] : memref<2x16x40xf32, #tpu.memory_space<vmem>>, vector<1x16x40xf32>
    %78 = vector.shape_cast %77 : vector<1x16x40xf32> to vector<16x40xf32>
    %cst_57 = arith.constant dense<0.000000e+00> : vector<16x128xf32>
    %79 = tpu.matmul %78, %76, %cst_57 {dimension_numbers = #tpu.dot_dimension_numbers<[1], [0], [0], [1], [0, 0, 1, 1], [], []>} : vector<16x40xf32>, vector<40x128xf32>, vector<16x128xf32> -> vector<16x128xf32>
    %c1_58 = arith.constant 1 : index
    %c0_59 = arith.constant 0 : index
    %c0_60 = arith.constant 0 : index
    %80 = vector.load %arg5[%c1_58, %c0_59, %c0_60] : memref<2x16x1xf32, #tpu.memory_space<vmem>>, vector<1x16x1xf32>
    %81 = vector.shape_cast %80 : vector<1x16x1xf32> to vector<16x1xf32>
    %82 = vector.broadcast %81 : vector<16x1xf32> to vector<16x128xf32>
    %83 = arith.addf %79, %82 : vector<16x128xf32>
    %cst_61 = arith.constant 5.000000e-01 : f32
    %84 = vector.broadcast %cst_61 : f32 to vector<16x128xf32>
    %85 = arith.mulf %84, %83 : vector<16x128xf32>
    %cst_62 = arith.constant 2.000000e+00 : f32
    %86 = math.sqrt %cst_62 : f32
    %cst_63 = arith.constant 1.000000e+00 : f32
    %87 = arith.divf %cst_63, %86 : f32
    %88 = vector.broadcast %87 : f32 to vector<16x128xf32>
    %89 = arith.mulf %83, %88 : vector<16x128xf32>
    %90 = math.erf %89 : vector<16x128xf32>
    %cst_64 = arith.constant 1.000000e+00 : f32
    %91 = vector.broadcast %cst_64 : f32 to vector<16x128xf32>
    %92 = arith.addf %91, %90 : vector<16x128xf32>
    %93 = arith.mulf %85, %92 : vector<16x128xf32>
    %c1_65 = arith.constant 1 : index
    %c0_66 = arith.constant 0 : index
    %c0_67 = arith.constant 0 : index
    %94 = vector.load %arg6[%c1_65, %c0_66, %c0_67] : memref<2x8x16xf32, #tpu.memory_space<vmem>>, vector<1x8x16xf32>
    %95 = vector.shape_cast %94 : vector<1x8x16xf32> to vector<8x16xf32>
    %cst_68 = arith.constant dense<0.000000e+00> : vector<8x128xf32>
    %96 = tpu.matmul %95, %93, %cst_68 {dimension_numbers = #tpu.dot_dimension_numbers<[1], [0], [0], [1], [0, 0, 1, 1], [], []>} : vector<8x16xf32>, vector<16x128xf32>, vector<8x128xf32> -> vector<8x128xf32>
    %c1_69 = arith.constant 1 : index
    %c0_70 = arith.constant 0 : index
    %c0_71 = arith.constant 0 : index
    %97 = vector.load %arg7[%c1_69, %c0_70, %c0_71] : memref<2x8x1xf32, #tpu.memory_space<vmem>>, vector<1x8x1xf32>
    %98 = vector.shape_cast %97 : vector<1x8x1xf32> to vector<8x1xf32>
    %99 = vector.broadcast %98 : vector<8x1xf32> to vector<8x128xf32>
    %100 = arith.addf %96, %99 : vector<8x128xf32>
    %101 = arith.addf %59, %100 : vector<8x128xf32>
    %102 = vector.broadcast %8 : vector<1x128xf32> to vector<8x128xf32>
    %103 = arith.mulf %101, %102 : vector<8x128xf32>
    %c0_72 = arith.constant 0 : index
    %c0_73 = arith.constant 0 : index
    %c0_74 = arith.constant 0 : index
    %104 = vector.load %arg8[%c0_72, %c0_73, %c0_74] : memref<1x8x128xf32, #tpu.memory_space<vmem>>, vector<1x8x128xf32>
    %105 = vector.shape_cast %104 : vector<1x8x128xf32> to vector<8x128xf32>
    %106 = vector.shape_cast %103 : vector<8x128xf32> to vector<1x8x128xf32>
    tpu.vector_store %arg8[%c0_72, %c0_73, %c0_74], %106 {strides = array<i32>} : memref<1x8x128xf32, #tpu.memory_space<vmem>>, vector<1x8x128xf32>,
    return
  }
  func.func @transform_0(%arg0: i32) -> (i32, i32, i32) {
    %c0_i32 = arith.constant 0 : i32
    %c0_i32_0 = arith.constant 0 : i32
    %c0_i32_1 = arith.constant 0 : i32
    return %arg0, %c0_i32, %c0_i32_0 : i32, i32, i32
  }
  func.func @transform_1(%arg0: i32) -> (i32, i32, i32) {
    %c0_i32 = arith.constant 0 : i32
    %c0_i32_0 = arith.constant 0 : i32
    %c0_i32_1 = arith.constant 0 : i32
    %c0_i32_2 = arith.constant 0 : i32
    return %c0_i32, %c0_i32_0, %c0_i32_1 : i32, i32, i32
  }
  func.func @transform_2(%arg0: i32) -> (i32, i32, i32) {
    %c0_i32 = arith.constant 0 : i32
    %c0_i32_0 = arith.constant 0 : i32
    %c0_i32_1 = arith.constant 0 : i32
    %c0_i32_2 = arith.constant 0 : i32
    return %c0_i32, %c0_i32_0, %c0_i32_1 : i32, i32, i32
  }
  func.func @transform_3(%arg0: i32) -> (i32, i32, i32) {
    %c0_i32 = arith.constant 0 : i32
    %c0_i32_0 = arith.constant 0 : i32
    %c0_i32_1 = arith.constant 0 : i32
    %c0_i32_2 = arith.constant 0 : i32
    return %c0_i32, %c0_i32_0, %c0_i32_1 : i32, i32, i32
  }
  func.func @transform_4(%arg0: i32) -> (i32, i32, i32) {
    %c0_i32 = arith.constant 0 : i32
    %c0_i32_0 = arith.constant 0 : i32
    %c0_i32_1 = arith.constant 0 : i32
    %c0_i32_2 = arith.constant 0 : i32
    return %c0_i32, %c0_i32_0, %c0_i32_1 : i32, i32, i32
  }
  func.func @transform_5(%arg0: i32) -> (i32, i32, i32) {
    %c0_i32 = arith.constant 0 : i32
    %c0_i32_0 = arith.constant 0 : i32
    %c0_i32_1 = arith.constant 0 : i32
    %c0_i32_2 = arith.constant 0 : i32
    return %c0_i32, %c0_i32_0, %c0_i32_1 : i32, i32, i32
  }
  func.func @transform_6(%arg0: i32) -> (i32, i32, i32) {
    %c0_i32 = arith.constant 0 : i32
    %c0_i32_0 = arith.constant 0 : i32
    %c0_i32_1 = arith.constant 0 : i32
    %c0_i32_2 = arith.constant 0 : i32
    return %c0_i32, %c0_i32_0, %c0_i32_1 : i32, i32, i32
  }
  func.func @transform_7(%arg0: i32) -> (i32, i32, i32) {
    %c0_i32 = arith.constant 0 : i32
    %c0_i32_0 = arith.constant 0 : i32
    %c0_i32_1 = arith.constant 0 : i32
    return %arg0, %c0_i32, %c0_i32_0 : i32, i32, i32
  }
}

</mosaic_0001>

<llo_original>
// kernel: tpu_custom_call.1
$region0: #{tpu_custom_call.1}
  #allocation0 [shape = 'u32[]', space=smem, size = 0x4, offset = 0x4, fixed_abs, tag = 'smem constant byte address 0x4 - core index']
  #allocation1 [shape = 'u32[144,128]{1,0:T(1,128)}', space=vmem, size = 0x12000, scoped, tag = 'internal scratch']
  #allocation2 [shape = 'f32[8,260]{1,0:T(8,128)}', space=vmem, size = 0x3000, scoped, tag = 'scratch operand']
  %s0 = inlined_call_operand.vmem [shape: f32[2,8,128], index: 0, kind: input, shape index: {}]
  %s1 = inlined_call_operand.vmem [shape: f32[2,8,1], index: 1, kind: input, shape index: {}]
  %s2 = inlined_call_operand.vmem [shape: f32[2,8,1], index: 2, kind: input, shape index: {}]
  %s3 = inlined_call_operand.vmem [shape: f32[2,16,40], index: 3, kind: input, shape index: {}]
  %s4 = inlined_call_operand.vmem [shape: f32[2,16,1], index: 4, kind: input, shape index: {}]
  %s5 = inlined_call_operand.vmem [shape: f32[2,8,16], index: 5, kind: input, shape index: {}]
  %s6 = inlined_call_operand.vmem [shape: f32[2,8,1], index: 6, kind: input, shape index: {}]
  %s7 = inlined_call_operand.hbm [shape: f32[2,8,128], index: 7, kind: output, shape index: {}]
  %s8 = sld [smem:[#allocation0]]
  $region61: #{tpu_custom_call.1} parent=0
    _
  %s10 = ssub.s32 1, %s8
  %s11 = scalar_select 0, %s10, %s8
  $region1: #{tpu_custom_call.1} parent=0
    #allocation3 [shape = 'u8[8192]{0}', space=vmem, size = 0x2000, scoped, tag = 'output window, operand 0']
    #allocation4 [shape = 's32[2]{0}', space=sflag, size = 0x8, scoped, tag = 'scoped memory for tpu_custom_call.1']
    %12 = vsyncpa [#allocation4], 0
    %s13 = scalar_lea.sflag [#allocation4], 1
    %14 = vsyncpa %s13, 0
    loop: start=0, step=1, limit=4
    $region2: #{tpu_custom_call.1} parent=1 // loop_pre_header
      _
    $region3: #{tpu_custom_call.1} parent=1 // loop_header
      %s16 = sphi 0, %s20
      %p17 = scmp.ge.s32.totalorder %s16, 4
      %s26 = sphi 0, %s28
      %s29 = sphi 0, %s26
      %s30 = sphi 0, %s29
      %s46 = sphi 0, %s30
      %s50 = sphi 0, %s50
      %s52 = sphi 0, %s50
      %s53 = sphi 0, %s52
      %s67 = sphi 0, %s53
      %s71 = sphi 0, %s71
      %s73 = sphi 0, %s71
      %s74 = sphi 0, %s73
      %s88 = sphi 0, %s74
      %s92 = sphi 0, %s92
      %s94 = sphi 0, %s92
      %s95 = sphi 0, %s94
      %s109 = sphi 0, %s95
      %s113 = sphi 0, %s113
      %s115 = sphi 0, %s113
      %s116 = sphi 0, %s115
      %s130 = sphi 0, %s116
      %s134 = sphi 0, %s134
      %s136 = sphi 0, %s134
      %s137 = sphi 0, %s136
      %s151 = sphi 0, %s137
      %s155 = sphi 0, %s155
      %s157 = sphi 0, %s155
      %s158 = sphi 0, %s157
      %s172 = sphi 0, %s158
      %s178 = sphi 0, %s180
      %s181 = sphi 0, %s178
      %s182 = sphi 0, %s181
      %s198 = sphi 0, %s182
    $region4: #{tpu_custom_call.1} parent=1 // loop_header_branch
      %19 = sbr.rel (%p17) target = $region8
    $region5: #{tpu_custom_call.1} parent=1 // loop_body
      %s21 = ssub.s32 %s16, 1
      %s22 = ssub.s32 %s16, 2
      %s23 = sadd.s32 %s16, 1
      %s24 = ssub.s32 %s16, %s23
      %p25 = scmp.eq.s32.totalorder %s24, 0
      %s27 = sadd.s32 %s26, 1
      %s28 = scalar_select %p25, %s26, %s27
      %p31 = pneg %p25
      %p32 = scmp.eq.s32.totalorder %s16, 1
      %p33 = por %p31, %p32
      %p34 = scmp.ne.s32.totalorder %s26, %s29
      %p35 = scmp.eq.s32.totalorder %s16, 0
      %p36 = por %p34, %p35
      %p37 = scmp.ne.s32.totalorder %s26, %s29
      %p38 = scmp.eq.s32.totalorder %s21, 1
      %p39 = por %p37, %p38
      %p40 = scmp.ne.s32.totalorder %s29, %s30
      %p41 = scmp.eq.s32.totalorder %s21, 0
      %p42 = por %p40, %p41
      %p43 = scmp.ne.s32.totalorder %s29, %s30
      %p44 = scmp.eq.s32.totalorder %s22, 1
      %p45 = por %p43, %p44
      %p47 = scmp.ne.s32.totalorder %s30, %s46
      %p48 = scmp.eq.s32.totalorder %s22, 0
      %p49 = por %p47, %p48
      %s51 = sadd.s32 %s50, 1
      %p54 = scmp.eq.s32.totalorder %s16, 1
      %p55 = scmp.ne.s32.totalorder %s50, %s52
      %p56 = scmp.eq.s32.totalorder %s16, 0
      %p57 = por %p55, %p56
      %p58 = scmp.ne.s32.totalorder %s50, %s52
      %p59 = scmp.eq.s32.totalorder %s21, 1
      %p60 = por %p58, %p59
      %p61 = scmp.ne.s32.totalorder %s52, %s53
      %p62 = scmp.eq.s32.totalorder %s21, 0
      %p63 = por %p61, %p62
      %p64 = scmp.ne.s32.totalorder %s52, %s53
      %p65 = scmp.eq.s32.totalorder %s22, 1
      %p66 = por %p64, %p65
      %p68 = scmp.ne.s32.totalorder %s53, %s67
      %p69 = scmp.eq.s32.totalorder %s22, 0
      %p70 = por %p68, %p69
      %s72 = sadd.s32 %s71, 1
      %p75 = scmp.eq.s32.totalorder %s16, 1
      %p76 = scmp.ne.s32.totalorder %s71, %s73
      %p77 = scmp.eq.s32.totalorder %s16, 0
      %p78 = por %p76, %p77
      %p79 = scmp.ne.s32.totalorder %s71, %s73
      %p80 = scmp.eq.s32.totalorder %s21, 1
      %p81 = por %p79, %p80
      %p82 = scmp.ne.s32.totalorder %s73, %s74
      %p83 = scmp.eq.s32.totalorder %s21, 0
      %p84 = por %p82, %p83
      %p85 = scmp.ne.s32.totalorder %s73, %s74
      %p86 = scmp.eq.s32.totalorder %s22, 1
      %p87 = por %p85, %p86
      %p89 = scmp.ne.s32.totalorder %s74, %s88
      %p90 = scmp.eq.s32.totalorder %s22, 0
      %p91 = por %p89, %p90
      %s93 = sadd.s32 %s92, 1
      %p96 = scmp.eq.s32.totalorder %s16, 1
      %p97 = scmp.ne.s32.totalorder %s92, %s94
      %p98 = scmp.eq.s32.totalorder %s16, 0
      %p99 = por %p97, %p98
      %p100 = scmp.ne.s32.totalorder %s92, %s94
      %p101 = scmp.eq.s32.totalorder %s21, 1
      %p102 = por %p100, %p101
      %p103 = scmp.ne.s32.totalorder %s94, %s95
      %p104 = scmp.eq.s32.totalorder %s21, 0
      %p105 = por %p103, %p104
      %p106 = scmp.ne.s32.totalorder %s94, %s95
      %p107 = scmp.eq.s32.totalorder %s22, 1
      %p108 = por %p106, %p107
      %p110 = scmp.ne.s32.totalorder %s95, %s109
      %p111 = scmp.eq.s32.totalorder %s22, 0
      %p112 = por %p110, %p111
      %s114 = sadd.s32 %s113, 1
      %p117 = scmp.eq.s32.totalorder %s16, 1
      %p118 = scmp.ne.s32.totalorder %s113, %s115
      %p119 = scmp.eq.s32.totalorder %s16, 0
      %p120 = por %p118, %p119
      %p121 = scmp.ne.s32.totalorder %s113, %s115
      %p122 = scmp.eq.s32.totalorder %s21, 1
      %p123 = por %p121, %p122
      %p124 = scmp.ne.s32.totalorder %s115, %s116
      %p125 = scmp.eq.s32.totalorder %s21, 0
      %p126 = por %p124, %p125
      %p127 = scmp.ne.s32.totalorder %s115, %s116
      %p128 = scmp.eq.s32.totalorder %s22, 1
      %p129 = por %p127, %p128
      %p131 = scmp.ne.s32.totalorder %s116, %s130
      %p132 = scmp.eq.s32.totalorder %s22, 0
      %p133 = por %p131, %p132
      %s135 = sadd.s32 %s134, 1
      %p138 = scmp.eq.s32.totalorder %s16, 1
      %p139 = scmp.ne.s32.totalorder %s134, %s136
      %p140 = scmp.eq.s32.totalorder %s16, 0
      %p141 = por %p139, %p140
      %p142 = scmp.ne.s32.totalorder %s134, %s136
      %p143 = scmp.eq.s32.totalorder %s21, 1
      %p144 = por %p142, %p143
      %p145 = scmp.ne.s32.totalorder %s136, %s137
      %p146 = scmp.eq.s32.totalorder %s21, 0
      %p147 = por %p145, %p146
      %p148 = scmp.ne.s32.totalorder %s136, %s137
      %p149 = scmp.eq.s32.totalorder %s22, 1
      %p150 = por %p148, %p149
      %p152 = scmp.ne.s32.totalorder %s137, %s151
      %p153 = scmp.eq.s32.totalorder %s22, 0
      %p154 = por %p152, %p153
      %s156 = sadd.s32 %s155, 1
      %p159 = scmp.eq.s32.totalorder %s16, 1
      %p160 = scmp.ne.s32.totalorder %s155, %s157
      %p161 = scmp.eq.s32.totalorder %s16, 0
      %p162 = por %p160, %p161
      %p163 = scmp.ne.s32.totalorder %s155, %s157
      %p164 = scmp.eq.s32.totalorder %s21, 1
      %p165 = por %p163, %p164
      %p166 = scmp.ne.s32.totalorder %s157, %s158
      %p167 = scmp.eq.s32.totalorder %s21, 0
      %p168 = por %p166, %p167
      %p169 = scmp.ne.s32.totalorder %s157, %s158
      %p170 = scmp.eq.s32.totalorder %s22, 1
      %p171 = por %p169, %p170
      %p173 = scmp.ne.s32.totalorder %s158, %s172
      %p174 = scmp.eq.s32.totalorder %s22, 0
      %p175 = por %p173, %p174
      %s176 = ssub.s32 %s16, %s23
      %p177 = scmp.eq.s32.totalorder %s176, 0
      %s179 = sadd.s32 %s178, 1
      %s180 = scalar_select %p177, %s178, %s179
      %p183 = pneg %p177
      %p184 = scmp.eq.s32.totalorder %s16, 1
      %p185 = por %p183, %p184
      %p186 = scmp.ne.s32.totalorder %s178, %s181
      %p187 = scmp.eq.s32.totalorder %s16, 0
      %p188 = por %p186, %p187
      %p189 = scmp.ne.s32.totalorder %s178, %s181
      %p190 = scmp.eq.s32.totalorder %s21, 1
      %p191 = por %p189, %p190
      %p192 = scmp.ne.s32.totalorder %s181, %s182
      %p193 = scmp.eq.s32.totalorder %s21, 0
      %p194 = por %p192, %p193
      %p195 = scmp.ne.s32.totalorder %s181, %s182
      %p196 = scmp.eq.s32.totalorder %s22, 1
      %p197 = por %p195, %p196
      %p199 = scmp.ne.s32.totalorder %s182, %s198
      %p200 = scmp.eq.s32.totalorder %s22, 0
      %p201 = por %p199, %p200
      %p202 = scmp.le.s32.totalorder 1, %s16
      %p203 = scmp.lt.s32.totalorder %s16, 3
      %p204 = pnand %p202, %p203
      %p205 = pneg %p204
      // Predicated region
      $region9: #{tpu_custom_call.1} parent=5 // pred_check
        _
      $region10: #{tpu_custom_call.1} parent=5 // pred_check_branch
        %207 = sbr.rel (%p204) target = $region12
      $region11: #{tpu_custom_call.1} parent=5 // pred_region
        %s208 = ssub.s32 %s16, 1
        // Predicated region
        $region13: #{tpu_custom_call.1} parent=11 // pred_check
          %p209 = pneg %p63
        $region14: #{tpu_custom_call.1} parent=11 // pred_check_branch
          %211 = sbr.rel (%p209) target = $region16
        $region15: #{tpu_custom_call.1} parent=11 // pred_region
          _
        $region16: #{tpu_custom_call.1} parent=11 // pred_fallthru
          _
        // Predicated region
        $region17: #{tpu_custom_call.1} parent=11 // pred_check
          %p212 = pneg %p84
        $region18: #{tpu_custom_call.1} parent=11 // pred_check_branch
          %214 = sbr.rel (%p212) target = $region20
        $region19: #{tpu_custom_call.1} parent=11 // pred_region
          _
        $region20: #{tpu_custom_call.1} parent=11 // pred_fallthru
          _
        // Predicated region
        $region21: #{tpu_custom_call.1} parent=11 // pred_check
          %p215 = pneg %p105
        $region22: #{tpu_custom_call.1} parent=11 // pred_check_branch
          %217 = sbr.rel (%p215) target = $region24
        $region23: #{tpu_custom_call.1} parent=11 // pred_region
          _
        $region24: #{tpu_custom_call.1} parent=11 // pred_fallthru
          _
        // Predicated region
        $region25: #{tpu_custom_call.1} parent=11 // pred_check
          %p218 = pneg %p126
        $region26: #{tpu_custom_call.1} parent=11 // pred_check_branch
          %220 = sbr.rel (%p218) target = $region28
        $region27: #{tpu_custom_call.1} parent=11 // pred_region
          _
        $region28: #{tpu_custom_call.1} parent=11 // pred_fallthru
          _
        // Predicated region
        $region29: #{tpu_custom_call.1} parent=11 // pred_check
          %p221 = pneg %p147
        $region30: #{tpu_custom_call.1} parent=11 // pred_check_branch
          %223 = sbr.rel (%p221) target = $region32
        $region31: #{tpu_custom_call.1} parent=11 // pred_region
          _
        $region32: #{tpu_custom_call.1} parent=11 // pred_fallthru
          _
        // Predicated region
        $region33: #{tpu_custom_call.1} parent=11 // pred_check
          %p224 = pneg %p168
        $region34: #{tpu_custom_call.1} parent=11 // pred_check_branch
          %226 = sbr.rel (%p224) target = $region36
        $region35: #{tpu_custom_call.1} parent=11 // pred_region
          _
        $region36: #{tpu_custom_call.1} parent=11 // pred_fallthru
          _
      $region12: #{tpu_custom_call.1} parent=5 // pred_fallthru
        _
      %p227 = scmp.lt.s32.totalorder %s16, 2
      // Predicated region
      $region37: #{tpu_custom_call.1} parent=5 // pred_check
        %p228 = pneg %p227
      $region38: #{tpu_custom_call.1} parent=5 // pred_check_branch
        %230 = sbr.rel (%p228) target = $region40
      $region39: #{tpu_custom_call.1} parent=5 // pred_region
        // Predicated region
        $region41: #{tpu_custom_call.1} parent=39 // pred_check
          %p231 = pneg %p36
        $region42: #{tpu_custom_call.1} parent=39 // pred_check_branch
          %233 = sbr.rel (%p231) target = $region44
        $region43: #{tpu_custom_call.1} parent=39 // pred_region
          %p234 = scmp.lt.s32.totalorder %s16, 1
          %s235 = scalar_select %p234, %s16, 1
          %s236 = smul.addr %s235, 8
          %s237 = scalar_lea.vmem %s0, %s236
        $region44: #{tpu_custom_call.1} parent=39 // pred_fallthru
          _
      $region40: #{tpu_custom_call.1} parent=5 // pred_fallthru
        _
      %p238 = scmp.le.s32.totalorder 1, %s16
      %p239 = scmp.lt.s32.totalorder %s16, 3
      %p240 = pnand %p238, %p239
      %p241 = pneg %p240
      // Predicated region
      $region45: #{tpu_custom_call.1} parent=5 // pred_check
        _
      $region46: #{tpu_custom_call.1} parent=5 // pred_check_branch
        %243 = sbr.rel (%p240) target = $region48
      $region47: #{tpu_custom_call.1} parent=5 // pred_region
        %s244 = ssub.s32 %s16, 1
        %p245 = scmp.lt.s32.totalorder %s21, 1
        %s246 = scalar_select %p245, %s21, 1
        %s247 = smul.addr %s246, 8
        %s248 = scalar_lea.vmem %s0, %s247
        %p249 = pneg %p42
        %p250 = pneg %p39
        %p251 = pneg %p63
        %p252 = pneg %p60
        %p253 = pneg %p84
        %p254 = pneg %p81
        %p255 = pneg %p105
        %p256 = pneg %p102
        %p257 = pneg %p126
        %p258 = pneg %p123
        %p259 = pneg %p147
        %p260 = pneg %p144
        %p261 = pneg %p168
        %p262 = pneg %p165
        %p263 = pneg %p194
        %p264 = pneg %p191
        %s265 = sand.u32 %s181, 1
        %s266 = scalar_lea.sflag [#allocation4], %s265
        %s267 = sand.u32 %s181, 1
        %s268 = smul.addr %s267, 8
        %s269 = scalar_lea.vmem [#allocation3], %s268
        %p270 = scmp.lt.s32.totalorder %s21, 1
        %s271 = scalar_select %p270, %s21, 1
        %s272 = smul.addr %s271, 8
        %s273 = scalar_lea.vmem %s0, %s272
        %v274 = vld [vmem:[%s273] sm:$0xff]
        %v275 = vand.u32 2147483647, %v274
        %v276 = vrot.slane %v275, 4
        %v277 = vadd.f32 %v275, %v276
        %v278 = vrot.slane %v277, 2
        %v279 = vadd.f32 %v277, %v278
        %v280 = vrot.slane %v279, 1
        %v281 = vadd.f32 %v279, %v280
        %vm282 = vcmp.gt.f32.partialorder %v281, 0.0
        %v283 = vsel %vm282, 1, 0
        %v284 = vcvt.s32.f32 %v283
        %v285 = vlaneseq
        %v286 = vand.u32 %v285, 127
        %vm287 = vcmp.lt.s32.totalorder %v286, 16
        %v288 = vsel %vm287, 1, 0
        %v289 = vcvt.s32.f32 %v288
        %290 = vst [vmem:[#allocation2] sm:$0xff] 0.0
        %291 = vst [vmem:[#allocation2 + $0x8] sm:$0xff] 0.0
        %vm292 = vcmask 31744
        %293 = vst.msk [vmem:[#allocation2 + $0x10] sm:$0xff] %vm292, 0.0
        %v294 = vld [vmem:[%s1] sm:$0xff]
        %296 = vset.pattern.permute.xlu0 0
        %297 = vperm.xlu0 %296, %v294
        %v298 = vpop.permute.xlu0 %297
        %v300 = vmul.f32 %v274, %v298
        %v301 = vld [vmem:[%s2] sm:$0xff]
        %303 = vset.pattern.permute.xlu0 0
        %304 = vperm.xlu0 %303, %v301
        %v305 = vpop.permute.xlu0 %304
        %v307 = vadd.f32 %v300, %v305
        %v308 = vmul.f32 %v307, %v289
        %309 = vst [vmem:[#allocation2 + $0x8] sm:$0xff] %v308
        %v310 = vld [vmem:[#allocation2] sm:$0xff]
        %v311 = vld [vmem:[#allocation2 + $0x8] sm:$0xff]
        %v312 = vld [vmem:[#allocation2 + $0x10] sm:$0xff]
        %315 = vrot.lane.b32.xlu0 %v310, 126
        %v316 = vpop.permute.xlu0 %315
        %317 = vrot.lane.b32.xlu0 %v311, 126
        %v318 = vpop.permute.xlu0 %317
        %vm319 = vcmask 1031168
        %v320 = vsel %vm319, %v316, %v318
        %321 = vrot.lane.b32.xlu0 %v311, 124
        %v322 = vpop.permute.xlu0 %321
        %324 = vrot.lane.b32.xlu0 %v311, 122
        %v325 = vpop.permute.xlu0 %324
        %326 = vrot.lane.b32.xlu0 %v312, 122
        %v327 = vpop.permute.xlu0 %326
        %vm328 = vcmask 998400
        %v329 = vsel %vm328, %v325, %v327
        %330 = vrot.lane.b32.xlu0 %v311, 120
        %v331 = vpop.permute.xlu0 %330
        %332 = vrot.lane.b32.xlu0 %v312, 120
        %v333 = vpop.permute.xlu0 %332
        %vm334 = vcmask 982016
        %v335 = vsel %vm334, %v331, %v333
        %v336 = vld [vmem:[%s3] sm:$0xff]
        %v337 = vld [vmem:[%s3 + $0x8] sm:$0xff]
        %v338 = vld [vmem:[%s4] sm:$0xff]
        %v339 = vld [vmem:[%s4 + $0x8] sm:$0xff]
        %341 = vset.pattern.permute.xlu0 0
        %342 = vperm.xlu0 %341, %v338
        %v343 = vpop.permute.xlu0 %342
        %346 = vset.pattern.permute.xlu0 0
        %347 = vperm.xlu0 %346, %v339
        %v348 = vpop.permute.xlu0 %347
        %350 = vrot.lane.b32.xlu0 %v310, 4
        %v351 = vpop.permute.xlu0 %350
        %352 = vrot.lane.b32.xlu0 %v311, 4
        %v353 = vpop.permute.xlu0 %352
        %354 = vrot.lane.b32.xlu0 %v320, 4
        %v355 = vpop.permute.xlu0 %354
        %356 = vrot.lane.b32.xlu0 %v318, 4
        %v357 = vpop.permute.xlu0 %356
        %358 = vrot.lane.b32.xlu0 %v322, 4
        %v359 = vpop.permute.xlu0 %358
        %360 = vrot.lane.b32.xlu0 %v325, 4
        %v361 = vpop.permute.xlu0 %360
        %362 = vrot.lane.b32.xlu0 %v329, 4
        %v363 = vpop.permute.xlu0 %362
        %364 = vrot.lane.b32.xlu0 %v331, 4
        %v365 = vpop.permute.xlu0 %364
        %366 = vrot.lane.b32.xlu0 %v335, 4
        %v367 = vpop.permute.xlu0 %366
        %v368 = vsel %vm292, %v351, %v353
        %v369 = vsel %vm292, %v355, %v357
        %v370 = vsel %vm292, %v361, %v363
        %v371 = vsel %vm292, %v365, %v367
        %vm377 = vcmask 326656
        %v379 = vsel %vm377, %v336, 0
        %v382 = vsel %vm377, %v337, 0
        %384 = vmatprep.subr.mxu0 0.0
        %385 = vmatpush1.msra.mxu0 %v368
        %386 = vmatprep.subr.mxu0 0.0
        %387 = vmatpush1.msra.mxu0 %v369
        %388 = vmatprep.subr.mxu0 0.0
        %389 = vmatpush1.msra.mxu0 %v359
        %390 = vmatprep.subr.mxu0 0.0
        %391 = vmatpush1.msra.mxu0 %v370
        %392 = vmatprep.subr.mxu0 0.0
        %393 = vmatpush1.msra.mxu0 %v371
        %394 = vmatprep.subr.mxu0 0.0
        %395 = vmatpush1.msra.mxu0 0.0
        %396 = vmatprep.subr.mxu0 0.0
        %397 = vmatpush1.msra.mxu0 0.0
        %398 = vmatprep.subr.mxu0 0.0
        %399 = vmatpush1.msra.mxu0 0.0
        %400 = vmatprep.subr.mxu0 0.0
        %401 = vmatpush1.msra.mxu0 0.0
        %402 = vmatprep.subr.mxu0 0.0
        %403 = vmatpush1.msra.mxu0 0.0
        %404 = vmatprep.subr.mxu0 0.0
        %405 = vmatpush1.msra.mxu0 0.0
        %406 = vmatprep.subr.mxu0 0.0
        %407 = vmatpush1.msra.mxu0 0.0
        %408 = vmatprep.subr.mxu0 0.0
        %409 = vmatpush1.msra.mxu0 0.0
        %410 = vmatprep.subr.mxu0 0.0
        %411 = vmatpush1.msra.mxu0 0.0
        %412 = vmatprep.subr.mxu0 0.0
        %413 = vmatpush1.msra.mxu0 0.0
        %414 = vmatprep.subr.mxu0 0.0
        %415 = vmatpush1.msra.mxu0 0.0
        %416 = vmatprep.subr.mxu0 0.0
        %417 = vmatpush1.msra.mxu0 0.0
        %418 = vmatprep.subr.mxu0 0.0
        %419 = vmatpush1.msra.mxu0 0.0
        %420 = vmatprep.subr.mxu0 0.0
        %421 = vmatpush1.msra.mxu0 0.0
        %422 = vmatprep.subr.mxu0 0.0
        %423 = vmatpush1.msra.mxu0 0.0
        %424 = vmatprep.subr.mxu0 0.0
        %425 = vmatpush1.msra.mxu0 0.0
        %426 = vmatprep.subr.mxu0 0.0
        %427 = vmatpush1.msra.mxu0 0.0
        %428 = vmatprep.subr.mxu0 0.0
        %429 = vmatpush1.msra.mxu0 0.0
        %430 = vmatprep.subr.mxu0 0.0
        %431 = vmatpush1.msra.mxu0 0.0
        %432 = vmatprep.subr.mxu0 0.0
        %433 = vmatpush1.msra.mxu0 0.0
        %434 = vmatprep.subr.mxu0 0.0
        %435 = vmatpush1.msra.mxu0 0.0
        %436 = vmatprep.subr.mxu0 0.0
        %437 = vmatpush1.msra.mxu0 0.0
        %438 = vmatprep.subr.mxu0 0.0
        %439 = vmatpush1.msra.mxu0 0.0
        %440 = vmatprep.subr.mxu0 0.0
        %441 = vmatpush1.msra.mxu0 0.0
        %442 = vmatprep.subr.mxu0 0.0
        %443 = vmatpush1.msra.mxu0 0.0
        %444 = vmatprep.subr.mxu0 0.0
        %445 = vmatpush1.msra.mxu0 0.0
        %446 = vmatprep.subr.mxu0 0.0
        %447 = vmatpush1.msra.mxu0 0.0
        %448 = vmatprep.mubr.f32.mxu0 0.0
        %449 = vmatmul.mubr.f32.gmra.mrb[0].mxu0 %v379
        %v450 = vpop.f32.mrb[0].mxu0
        %v451 = vadd.f32 %v343, %v450
        %v452 = vpop.f32.mrb[0].mxu0
        %453 = vmatprep.mubr.f32.mxu0 0.0
        %454 = vmatmul.mubr.f32.gmra.mrb[0].mxu0 %v382
        %v455 = vpop.f32.mrb[0].mxu0
        %v456 = vadd.f32 %v348, %v455
        %v457 = vpop.f32.mrb[0].mxu0
        %458 = vdwg.mxu0
        %v459 = vmul.f32 %v451, 0.5
        %v460 = vmul.f32 %v456, 0.5
        %v461 = vmul.f32 %v451, 0.70710677
        %v462 = vmul.f32 %v456, 0.70710677
        %v463 = verf.f32.pop %v461
        %v464 = verf.f32.pop %v462
        %v465 = vadd.f32 %v463, 1.0
        %v466 = vadd.f32 %v464, 1.0
        %v467 = vmul.f32 %v459, %v465
        %v468 = vmul.f32 %v460, %v466
        %v469 = vld [vmem:[%s5] sm:$0xff]
        %v470 = vld [vmem:[%s6] sm:$0xff]
        %472 = vset.pattern.permute.xlu0 0
        %473 = vperm.xlu0 %472, %v470
        %v474 = vpop.permute.xlu0 %473
        %vm476 = vcmask 130048
        %v478 = vsel %vm476, %v469, 0
        %480 = vmatprep.subr.mxu0 0.0
        %481 = vmatpush1.msra.mxu0 %v467
        %482 = vmatprep.subr.mxu0 0.0
        %483 = vmatpush1.msra.mxu0 %v468
        %484 = vmatprep.subr.mxu0 0.0
        %485 = vmatpush1.msra.mxu0 0.0
        %486 = vmatprep.subr.mxu0 0.0
        %487 = vmatpush1.msra.mxu0 0.0
        %488 = vmatprep.subr.mxu0 0.0
        %489 = vmatpush1.msra.mxu0 0.0
        %490 = vmatprep.subr.mxu0 0.0
        %491 = vmatpush1.msra.mxu0 0.0
        %492 = vmatprep.subr.mxu0 0.0
        %493 = vmatpush1.msra.mxu0 0.0
        %494 = vmatprep.subr.mxu0 0.0
        %495 = vmatpush1.msra.mxu0 0.0
        %496 = vmatprep.subr.mxu0 0.0
        %497 = vmatpush1.msra.mxu0 0.0
        %498 = vmatprep.subr.mxu0 0.0
        %499 = vmatpush1.msra.mxu0 0.0
        %500 = vmatprep.subr.mxu0 0.0
        %501 = vmatpush1.msra.mxu0 0.0
        %502 = vmatprep.subr.mxu0 0.0
        %503 = vmatpush1.msra.mxu0 0.0
        %504 = vmatprep.subr.mxu0 0.0
        %505 = vmatpush1.msra.mxu0 0.0
        %506 = vmatprep.subr.mxu0 0.0
        %507 = vmatpush1.msra.mxu0 0.0
        %508 = vmatprep.subr.mxu0 0.0
        %509 = vmatpush1.msra.mxu0 0.0
        %510 = vmatprep.subr.mxu0 0.0
        %511 = vmatpush1.msra.mxu0 0.0
        %512 = vmatprep.subr.mxu0 0.0
        %513 = vmatpush1.msra.mxu0 0.0
        %514 = vmatprep.subr.mxu0 0.0
        %515 = vmatpush1.msra.mxu0 0.0
        %516 = vmatprep.subr.mxu0 0.0
        %517 = vmatpush1.msra.mxu0 0.0
        %518 = vmatprep.subr.mxu0 0.0
        %519 = vmatpush1.msra.mxu0 0.0
        %520 = vmatprep.subr.mxu0 0.0
        %521 = vmatpush1.msra.mxu0 0.0
        %522 = vmatprep.subr.mxu0 0.0
        %523 = vmatpush1.msra.mxu0 0.0
        %524 = vmatprep.subr.mxu0 0.0
        %525 = vmatpush1.msra.mxu0 0.0
        %526 = vmatprep.subr.mxu0 0.0
        %527 = vmatpush1.msra.mxu0 0.0
        %528 = vmatprep.subr.mxu0 0.0
        %529 = vmatpush1.msra.mxu0 0.0
        %530 = vmatprep.subr.mxu0 0.0
        %531 = vmatpush1.msra.mxu0 0.0
        %532 = vmatprep.subr.mxu0 0.0
        %533 = vmatpush1.msra.mxu0 0.0
        %534 = vmatprep.subr.mxu0 0.0
        %535 = vmatpush1.msra.mxu0 0.0
        %536 = vmatprep.subr.mxu0 0.0
        %537 = vmatpush1.msra.mxu0 0.0
        %538 = vmatprep.subr.mxu0 0.0
        %539 = vmatpush1.msra.mxu0 0.0
        %540 = vmatprep.subr.mxu0 0.0
        %541 = vmatpush1.msra.mxu0 0.0
        %542 = vmatprep.subr.mxu0 0.0
        %543 = vmatpush1.msra.mxu0 0.0
        %544 = vmatprep.mubr.f32.mxu0 0.0
        %545 = vmatmul.mubr.f32.gmra.mrb[0].mxu0 %v478
        %v546 = vpop.f32.mrb[0].mxu0
        %v547 = vadd.f32 %v474, %v546
        %v548 = vpop.f32.mrb[0].mxu0
        %549 = vdwg.mxu0
        %v550 = vadd.f32 %v274, %v547
        %v551 = vmul.f32 %v550, %v284
        %s552 = scalar_lea.vmem %s1, 8
        %v553 = vld [vmem:[%s552] sm:$0xff]
        %555 = vset.pattern.permute.xlu0 0
        %556 = vperm.xlu0 %555, %v553
        %v557 = vpop.permute.xlu0 %556
        %v559 = vmul.f32 %v551, %v557
        %s560 = scalar_lea.vmem %s2, 8
        %v561 = vld [vmem:[%s560] sm:$0xff]
        %563 = vset.pattern.permute.xlu0 0
        %564 = vperm.xlu0 %563, %v561
        %v565 = vpop.permute.xlu0 %564
        %v567 = vadd.f32 %v559, %v565
        %v568 = vmul.f32 %v567, %v289
        %569 = vst [vmem:[#allocation2 + $0x8] sm:$0xff] %v568
        %v570 = vld [vmem:[#allocation2] sm:$0xff]
        %v571 = vld [vmem:[#allocation2 + $0x8] sm:$0xff]
        %v572 = vld [vmem:[#allocation2 + $0x10] sm:$0xff]
        %575 = vrot.lane.b32.xlu0 %v570, 126
        %v576 = vpop.permute.xlu0 %575
        %577 = vrot.lane.b32.xlu0 %v571, 126
        %v578 = vpop.permute.xlu0 %577
        %v579 = vsel %vm319, %v576, %v578
        %580 = vrot.lane.b32.xlu0 %v571, 124
        %v581 = vpop.permute.xlu0 %580
        %583 = vrot.lane.b32.xlu0 %v571, 122
        %v584 = vpop.permute.xlu0 %583
        %585 = vrot.lane.b32.xlu0 %v572, 122
        %v586 = vpop.permute.xlu0 %585
        %v587 = vsel %vm328, %v584, %v586
        %588 = vrot.lane.b32.xlu0 %v571, 120
        %v589 = vpop.permute.xlu0 %588
        %590 = vrot.lane.b32.xlu0 %v572, 120
        %v591 = vpop.permute.xlu0 %590
        %v592 = vsel %vm334, %v589, %v591
        %s593 = scalar_lea.vmem %s3, 16
        %v594 = vld [vmem:[%s593] sm:$0xff]
        %v595 = vld [vmem:[%s593 + $0x8] sm:$0xff]
        %s596 = scalar_lea.vmem %s4, 16
        %v597 = vld [vmem:[%s596] sm:$0xff]
        %v598 = vld [vmem:[%s596 + $0x8] sm:$0xff]
        %600 = vset.pattern.permute.xlu0 0
        %601 = vperm.xlu0 %600, %v597
        %v602 = vpop.permute.xlu0 %601
        %605 = vset.pattern.permute.xlu0 0
        %606 = vperm.xlu0 %605, %v598
        %v607 = vpop.permute.xlu0 %606
        %609 = vrot.lane.b32.xlu0 %v570, 4
        %v610 = vpop.permute.xlu0 %609
        %611 = vrot.lane.b32.xlu0 %v571, 4
        %v612 = vpop.permute.xlu0 %611
        %613 = vrot.lane.b32.xlu0 %v579, 4
        %v614 = vpop.permute.xlu0 %613
        %615 = vrot.lane.b32.xlu0 %v578, 4
        %v616 = vpop.permute.xlu0 %615
        %617 = vrot.lane.b32.xlu0 %v581, 4
        %v618 = vpop.permute.xlu0 %617
        %619 = vrot.lane.b32.xlu0 %v584, 4
        %v620 = vpop.permute.xlu0 %619
        %621 = vrot.lane.b32.xlu0 %v587, 4
        %v622 = vpop.permute.xlu0 %621
        %623 = vrot.lane.b32.xlu0 %v589, 4
        %v624 = vpop.permute.xlu0 %623
        %625 = vrot.lane.b32.xlu0 %v592, 4
        %v626 = vpop.permute.xlu0 %625
        %v627 = vsel %vm292, %v610, %v612
        %v628 = vsel %vm292, %v614, %v616
        %v629 = vsel %vm292, %v620, %v622
        %v630 = vsel %vm292, %v624, %v626
        %v637 = vsel %vm377, %v594, 0
        %v640 = vsel %vm377, %v595, 0
        %642 = vmatprep.subr.mxu0 0.0
        %643 = vmatpush1.msra.mxu0 %v627
        %644 = vmatprep.subr.mxu0 0.0
        %645 = vmatpush1.msra.mxu0 %v628
        %646 = vmatprep.subr.mxu0 0.0
        %647 = vmatpush1.msra.mxu0 %v618
        %648 = vmatprep.subr.mxu0 0.0
        %649 = vmatpush1.msra.mxu0 %v629
        %650 = vmatprep.subr.mxu0 0.0
        %651 = vmatpush1.msra.mxu0 %v630
        %652 = vmatprep.subr.mxu0 0.0
        %653 = vmatpush1.msra.mxu0 0.0
        %654 = vmatprep.subr.mxu0 0.0
        %655 = vmatpush1.msra.mxu0 0.0
        %656 = vmatprep.subr.mxu0 0.0
        %657 = vmatpush1.msra.mxu0 0.0
        %658 = vmatprep.subr.mxu0 0.0
        %659 = vmatpush1.msra.mxu0 0.0
        %660 = vmatprep.subr.mxu0 0.0
        %661 = vmatpush1.msra.mxu0 0.0
        %662 = vmatprep.subr.mxu0 0.0
        %663 = vmatpush1.msra.mxu0 0.0
        %664 = vmatprep.subr.mxu0 0.0
        %665 = vmatpush1.msra.mxu0 0.0
        %666 = vmatprep.subr.mxu0 0.0
        %667 = vmatpush1.msra.mxu0 0.0
        %668 = vmatprep.subr.mxu0 0.0
        %669 = vmatpush1.msra.mxu0 0.0
        %670 = vmatprep.subr.mxu0 0.0
        %671 = vmatpush1.msra.mxu0 0.0
        %672 = vmatprep.subr.mxu0 0.0
        %673 = vmatpush1.msra.mxu0 0.0
        %674 = vmatprep.subr.mxu0 0.0
        %675 = vmatpush1.msra.mxu0 0.0
        %676 = vmatprep.subr.mxu0 0.0
        %677 = vmatpush1.msra.mxu0 0.0
        %678 = vmatprep.subr.mxu0 0.0
        %679 = vmatpush1.msra.mxu0 0.0
        %680 = vmatprep.subr.mxu0 0.0
        %681 = vmatpush1.msra.mxu0 0.0
        %682 = vmatprep.subr.mxu0 0.0
        %683 = vmatpush1.msra.mxu0 0.0
        %684 = vmatprep.subr.mxu0 0.0
        %685 = vmatpush1.msra.mxu0 0.0
        %686 = vmatprep.subr.mxu0 0.0
        %687 = vmatpush1.msra.mxu0 0.0
        %688 = vmatprep.subr.mxu0 0.0
        %689 = vmatpush1.msra.mxu0 0.0
        %690 = vmatprep.subr.mxu0 0.0
        %691 = vmatpush1.msra.mxu0 0.0
        %692 = vmatprep.subr.mxu0 0.0
        %693 = vmatpush1.msra.mxu0 0.0
        %694 = vmatprep.subr.mxu0 0.0
        %695 = vmatpush1.msra.mxu0 0.0
        %696 = vmatprep.subr.mxu0 0.0
        %697 = vmatpush1.msra.mxu0 0.0
        %698 = vmatprep.subr.mxu0 0.0
        %699 = vmatpush1.msra.mxu0 0.0
        %700 = vmatprep.subr.mxu0 0.0
        %701 = vmatpush1.msra.mxu0 0.0
        %702 = vmatprep.subr.mxu0 0.0
        %703 = vmatpush1.msra.mxu0 0.0
        %704 = vmatprep.subr.mxu0 0.0
        %705 = vmatpush1.msra.mxu0 0.0
        %706 = vmatprep.mubr.f32.mxu0 0.0
        %707 = vmatmul.mubr.f32.gmra.mrb[0].mxu0 %v637
        %v708 = vpop.f32.mrb[0].mxu0
        %v709 = vadd.f32 %v602, %v708
        %v710 = vpop.f32.mrb[0].mxu0
        %711 = vmatprep.mubr.f32.mxu0 0.0
        %712 = vmatmul.mubr.f32.gmra.mrb[0].mxu0 %v640
        %v713 = vpop.f32.mrb[0].mxu0
        %v714 = vadd.f32 %v607, %v713
        %v715 = vpop.f32.mrb[0].mxu0
        %716 = vdwg.mxu0
        %v717 = vmul.f32 %v709, 0.5
        %v718 = vmul.f32 %v714, 0.5
        %v719 = vmul.f32 %v709, 0.70710677
        %v720 = vmul.f32 %v714, 0.70710677
        %v721 = verf.f32.pop %v719
        %v722 = verf.f32.pop %v720
        %v723 = vadd.f32 %v721, 1.0
        %v724 = vadd.f32 %v722, 1.0
        %v725 = vmul.f32 %v717, %v723
        %v726 = vmul.f32 %v718, %v724
        %s727 = scalar_lea.vmem %s5, 8
        %v728 = vld [vmem:[%s727] sm:$0xff]
        %s729 = scalar_lea.vmem %s6, 8
        %v730 = vld [vmem:[%s729] sm:$0xff]
        %732 = vset.pattern.permute.xlu0 0
        %733 = vperm.xlu0 %732, %v730
        %v734 = vpop.permute.xlu0 %733
        %v737 = vsel %vm476, %v728, 0
        %739 = vmatprep.subr.mxu0 0.0
        %740 = vmatpush1.msra.mxu0 %v725
        %741 = vmatprep.subr.mxu0 0.0
        %742 = vmatpush1.msra.mxu0 %v726
        %743 = vmatprep.subr.mxu0 0.0
        %744 = vmatpush1.msra.mxu0 0.0
        %745 = vmatprep.subr.mxu0 0.0
        %746 = vmatpush1.msra.mxu0 0.0
        %747 = vmatprep.subr.mxu0 0.0
        %748 = vmatpush1.msra.mxu0 0.0
        %749 = vmatprep.subr.mxu0 0.0
        %750 = vmatpush1.msra.mxu0 0.0
        %751 = vmatprep.subr.mxu0 0.0
        %752 = vmatpush1.msra.mxu0 0.0
        %753 = vmatprep.subr.mxu0 0.0
        %754 = vmatpush1.msra.mxu0 0.0
        %755 = vmatprep.subr.mxu0 0.0
        %756 = vmatpush1.msra.mxu0 0.0
        %757 = vmatprep.subr.mxu0 0.0
        %758 = vmatpush1.msra.mxu0 0.0
        %759 = vmatprep.subr.mxu0 0.0
        %760 = vmatpush1.msra.mxu0 0.0
        %761 = vmatprep.subr.mxu0 0.0
        %762 = vmatpush1.msra.mxu0 0.0
        %763 = vmatprep.subr.mxu0 0.0
        %764 = vmatpush1.msra.mxu0 0.0
        %765 = vmatprep.subr.mxu0 0.0
        %766 = vmatpush1.msra.mxu0 0.0
        %767 = vmatprep.subr.mxu0 0.0
        %768 = vmatpush1.msra.mxu0 0.0
        %769 = vmatprep.subr.mxu0 0.0
        %770 = vmatpush1.msra.mxu0 0.0
        %771 = vmatprep.subr.mxu0 0.0
        %772 = vmatpush1.msra.mxu0 0.0
        %773 = vmatprep.subr.mxu0 0.0
        %774 = vmatpush1.msra.mxu0 0.0
        %775 = vmatprep.subr.mxu0 0.0
        %776 = vmatpush1.msra.mxu0 0.0
        %777 = vmatprep.subr.mxu0 0.0
        %778 = vmatpush1.msra.mxu0 0.0
        %779 = vmatprep.subr.mxu0 0.0
        %780 = vmatpush1.msra.mxu0 0.0
        %781 = vmatprep.subr.mxu0 0.0
        %782 = vmatpush1.msra.mxu0 0.0
        %783 = vmatprep.subr.mxu0 0.0
        %784 = vmatpush1.msra.mxu0 0.0
        %785 = vmatprep.subr.mxu0 0.0
        %786 = vmatpush1.msra.mxu0 0.0
        %787 = vmatprep.subr.mxu0 0.0
        %788 = vmatpush1.msra.mxu0 0.0
        %789 = vmatprep.subr.mxu0 0.0
        %790 = vmatpush1.msra.mxu0 0.0
        %791 = vmatprep.subr.mxu0 0.0
        %792 = vmatpush1.msra.mxu0 0.0
        %793 = vmatprep.subr.mxu0 0.0
        %794 = vmatpush1.msra.mxu0 0.0
        %795 = vmatprep.subr.mxu0 0.0
        %796 = vmatpush1.msra.mxu0 0.0
        %797 = vmatprep.subr.mxu0 0.0
        %798 = vmatpush1.msra.mxu0 0.0
        %799 = vmatprep.subr.mxu0 0.0
        %800 = vmatpush1.msra.mxu0 0.0
        %801 = vmatprep.subr.mxu0 0.0
        %802 = vmatpush1.msra.mxu0 0.0
        %803 = vmatprep.mubr.f32.mxu0 0.0
        %804 = vmatmul.mubr.f32.gmra.mrb[0].mxu0 %v737
        %v805 = vpop.f32.mrb[0].mxu0
        %v806 = vadd.f32 %v734, %v805
        %v807 = vpop.f32.mrb[0].mxu0
        %808 = vdwg.mxu0
        %v809 = vadd.f32 %v551, %v806
        %v810 = vmul.f32 %v809, %v284
        %811 = vst [vmem:[%s269] sm:$0xff] %v810
        %s812 = sand.u32 %s181, 1
        %s813 = scalar_lea.sflag [#allocation4], %s812
        %s814 = sand.u32 %s181, 1
        %s815 = smul.addr %s814, 8
        %s816 = scalar_lea.vmem [#allocation3], %s815
        // Predicated region
        $region49: #{tpu_custom_call.1} parent=47 // pred_check
          %p817 = pneg %p191
        $region50: #{tpu_custom_call.1} parent=47 // pred_check_branch
          %819 = sbr.rel (%p817) target = $region52
        $region51: #{tpu_custom_call.1} parent=47 // pred_region
          %s821 = ssub.s32 128, 128
          %822 = vsyncadd %s813, %s821
          %s823 = smul.addr %s21, 128
          %s824 = scalar_lea.hbm %s7, %s823
          %s826 = sshll.u32 %s816, 4
          %s827 = int_to_ptr.vmem [resolvable:$true] %s826
          %829 = dma.vmem_to_hbm [thread:$0]  %s827, 128, %s824, %s813
        $region52: #{tpu_custom_call.1} parent=47 // pred_fallthru
          _
      $region48: #{tpu_custom_call.1} parent=5 // pred_fallthru
        _
      %p830 = scmp.le.s32.totalorder 2, %s16
      // Predicated region
      $region53: #{tpu_custom_call.1} parent=5 // pred_check
        %p831 = pneg %p830
      $region54: #{tpu_custom_call.1} parent=5 // pred_check_branch
        %833 = sbr.rel (%p831) target = $region56
      $region55: #{tpu_custom_call.1} parent=5 // pred_region
        %s834 = ssub.s32 %s16, 2
        // Predicated region
        $region57: #{tpu_custom_call.1} parent=55 // pred_check
          %p835 = pneg %p197
        $region58: #{tpu_custom_call.1} parent=55 // pred_check_branch
          %837 = sbr.rel (%p835) target = $region60
        $region59: #{tpu_custom_call.1} parent=55 // pred_region
          %s838 = sand.u32 %s182, 1
          %s839 = scalar_lea.sflag [#allocation4], %s838
          %s840 = sand.u32 %s182, 1
          %s841 = smul.addr %s840, 8
          %s842 = scalar_lea.vmem [#allocation3], %s841
          %843 = dma.done %s839, 128
        $region60: #{tpu_custom_call.1} parent=55 // pred_fallthru
          _
      $region56: #{tpu_custom_call.1} parent=5 // pred_fallthru
        _
    $region6: #{tpu_custom_call.1} parent=1 // loop_footer
      %s20 = sadd.s32 1, %s16
    $region7: #{tpu_custom_call.1} parent=1 // loop_footer_branch
      %15 = sbr.rel target = $region3
    $region8: #{tpu_custom_call.1} parent=1 // loop_exit
      _
    %844 = vsyncpa [#allocation4], 1
    %s845 = scalar_lea.sflag [#allocation4], 1
    %846 = vsyncpa %s845, 1

</llo_original>
